<compile_context>
chip_gen: v5e
topology: v5e:2x2
jax: 0.10.0
libtpu: 0.0.40
codegen_flags: <defaults>
</compile_context>

<pallas_src>
import jax
import jax.numpy as jnp
from jax.experimental import pallas as pl
from jax.experimental.pallas import tpu as pltpu


def _round_up(x, m):
    return ((x + m - 1) // m) * m


def linear_kernel(params_ref, x_ref, o_ref):
    # params_ref: (3,) f32 in SMEM: [w00, w01, b0]
    # x_ref     : (2, tn) f32 VMEM tile (features on sublanes, batch on lanes)
    # o_ref     : (1, tn) f32 VMEM tile
    w0 = params_ref[0]
    w1 = params_ref[1]
    b0 = params_ref[2]
    x = x_ref[...]                                   # (2, tn)
    y = x[0:1, :] * w0 + x[1:2, :] * w1 + b0         # VPU fused multiply-add
    o_ref[...] = y.astype(o_ref.dtype)


def net_forward(x, w, b):
    """Pallas equivalent of Net.forward.

    x: (N, 2) float32
    w: (1, 2) float32 (PyTorch nn.Linear weight layout: (out, in))
    b: (1,)   float32
    returns (N, 1) float32
    """
    n, k = x.shape
    m = w.shape[0]
    assert k == 2 and m == 1, "Net.fc is nn.Linear(2, 1)"

    # Scalars for SMEM: [w00, w01, b0]
    params = jnp.concatenate(
        [w.reshape(-1), b.reshape(-1)]).astype(jnp.float32)

    # Lane-dense layout: batch on the lane axis.
    xt = jnp.transpose(x).astype(jnp.float32)        # (2, N)

    # Tile the lane axis: 512 lanes for large N, one 128-multiple tile if small.
    tn = min(512, _round_up(n, 128))
    n_pad = _round_up(n, tn)
    if n_pad != n:
        xt = jnp.pad(xt, ((0, 0), (0, n_pad - n)))

    out = pl.pallas_call(
        linear_kernel,
        out_shape=jax.ShapeDtypeStruct((1, n_pad), jnp.float32),
        grid=(n_pad // tn,),
        in_specs=[
            # 3 scalars, whole array in SMEM (no VMEM DMA / double-buffering).
            pl.BlockSpec(memory_space=pltpu.MemorySpace.SMEM),
            # (2, tn) input tile; sublane dim equals full array dim (=2).
            pl.BlockSpec((2, tn), lambda i: (0, i)),
        ],
        # Lane-dense (1, tn) output tile -> unmasked full-width stores.
        out_specs=pl.BlockSpec((1, tn), lambda i: (0, i)),
        compiler_params=pltpu.CompilerParams(
            dimension_semantics=("parallel",),
        ),
    )(params, xt)

    # Slice off lane padding and restore (N, 1) layout.
    return out[0, :n].reshape(n, 1).astype(x.dtype)


if __name__ == "__main__":
    key = jax.random.PRNGKey(0)
    kx, kw, kb = jax.random.split(key, 3)

    batch = 8
    in_features = 2
    out_features = 1

    # Deterministic synthetic parameters (nn.Linear(2, 1) shapes).
    x = jax.random.normal(kx, (batch, in_features), dtype=jnp.float32)
    w = jax.random.normal(kw, (out_features, in_features), dtype=jnp.float32) * 0.5
    b = jax.random.normal(kb, (out_features,), dtype=jnp.float32) * 0.1

    y = net_forward(x, w, b)
    y = jax.block_until_ready(y)

    # Reference check against plain JAX.
    y_ref = x @ w.T + b
    assert y.shape == (batch, out_features)
    assert jnp.allclose(y, y_ref, atol=1e-5, rtol=1e-5)

    print("KERNEL_OK")
</pallas_src>

<mosaic_0001>
module attributes {stable_mosaic.version = 11 : i64} {
  func.func @linear_kernel(%arg0: i32, %arg1: memref<3xf32, #tpu.memory_space<smem>>, %arg2: memref<2x128xf32, #tpu.memory_space<vmem>>, %arg3: memref<1x128xf32, #tpu.memory_space<vmem>>) attributes {dimension_semantics = [#tpu.dimension_semantics<parallel>], iteration_bounds = array<i64: 1>, scalar_prefetch = 0 : i64, scratch_operands = 0 : i64, tpu.core_type = #tpu.core_type<tc>, window_params = [{transform_indices = @transform_0, window_bounds = array<i64: 3>}, {transform_indices = @transform_1, window_bounds = array<i64: 2, 128>}, {transform_indices = @transform_2, window_bounds = array<i64: 1, 128>}]} {
    %c0 = arith.constant 0 : index
    %0 = memref.load %arg1[%c0] : memref<3xf32, #tpu.memory_space<smem>>
    %c1 = arith.constant 1 : index
    %1 = memref.load %arg1[%c1] : memref<3xf32, #tpu.memory_space<smem>>
    %c2 = arith.constant 2 : index
    %2 = memref.load %arg1[%c2] : memref<3xf32, #tpu.memory_space<smem>>
    %c0_0 = arith.constant 0 : index
    %c0_1 = arith.constant 0 : index
    %3 = vector.load %arg2[%c0_0, %c0_1] : memref<2x128xf32, #tpu.memory_space<vmem>>, vector<2x128xf32>
    %4 = vector.extract_strided_slice %3 {offsets = [0, 0], sizes = [1, 128], strides = [1, 1]} : vector<2x128xf32> to vector<1x128xf32>
    %5 = vector.broadcast %0 : f32 to vector<1x128xf32>
    %6 = arith.mulf %4, %5 : vector<1x128xf32>
    %7 = vector.extract_strided_slice %3 {offsets = [1, 0], sizes = [1, 128], strides = [1, 1]} : vector<2x128xf32> to vector<1x128xf32>
    %8 = vector.broadcast %1 : f32 to vector<1x128xf32>
    %9 = arith.mulf %7, %8 : vector<1x128xf32>
    %10 = arith.addf %6, %9 : vector<1x128xf32>
    %11 = vector.broadcast %2 : f32 to vector<1x128xf32>
    %12 = arith.addf %10, %11 : vector<1x128xf32>
    %c0_2 = arith.constant 0 : index
    %c0_3 = arith.constant 0 : index
    %13 = vector.load %arg3[%c0_2, %c0_3] : memref<1x128xf32, #tpu.memory_space<vmem>>, vector<1x128xf32>
    tpu.vector_store %arg3[%c0_2, %c0_3], %12 {strides = array<i32>} : memref<1x128xf32, #tpu.memory_space<vmem>>, vector<1x128xf32>,
    return
  }
  func.func @transform_0(%arg0: i32) -> i32 {
    %c0_i32 = arith.constant 0 : i32
    %c0_i32_0 = arith.constant 0 : i32
    return %c0_i32 : i32
  }
  func.func @transform_1(%arg0: i32) -> (i32, i32) {
    %c0_i32 = arith.constant 0 : i32
    %c0_i32_0 = arith.constant 0 : i32
    return %c0_i32, %arg0 : i32, i32
  }
  func.func @transform_2(%arg0: i32) -> (i32, i32) {
    %c0_i32 = arith.constant 0 : i32
    %c0_i32_0 = arith.constant 0 : i32
    return %c0_i32, %arg0 : i32, i32
  }
}

</mosaic_0001>

<llo_original>
// kernel: tpu_custom_call.1
$region0: #{tpu_custom_call.1}
  #allocation0 [shape = 'u32[]', space=smem, size = 0x4, offset = 0x4, fixed_abs, tag = 'smem constant byte address 0x4 - core index']
  #allocation1 [shape = 'u32[72,128]{1,0:T(1,128)}', space=vmem, size = 0x9000, scoped, tag = 'internal scratch']
  %s0 = inlined_call_operand.hbm [shape: f32[3], index: 0, kind: input, shape index: {}]
  %s1 = inlined_call_operand.hbm [shape: f32[2,128], index: 1, kind: input, shape index: {}]
  %s2 = inlined_call_operand.hbm [shape: f32[1,128], index: 2, kind: output, shape index: {}]
  %s3 = sld [smem:[#allocation0]]
  $region26: #{tpu_custom_call.1} parent=0
    _
  %s5 = ssub.s32 1, %s3
  %s6 = scalar_select 0, %s5, %s3
  $region1: #{tpu_custom_call.1} parent=0
    #allocation2 [shape = 'u8[512]{0}', space=smem, size = 0x200, scoped, tag = 'input window, operand 0, single buffered']
    #allocation3 [shape = 's32[1]{0}', space=sflag, size = 0x4, scoped, tag = 'scoped memory for tpu_custom_call.1']
    #allocation4 [shape = 's32[1]{0}', space=sflag, size = 0x4, scoped, tag = 'scoped memory for tpu_custom_call.1']
    #allocation5 [shape = 's32[1]{0}', space=sflag, size = 0x4, scoped, tag = 'scoped memory for tpu_custom_call.1']
    #allocation6 [shape = 'u8[1024]{0}', space=vmem, size = 0x400, scoped, tag = 'input window, operand 1, single buffered']
    #allocation7 [shape = 'u8[512]{0}', space=vmem, size = 0x400, scoped, tag = 'output window, operand 0, single buffered']
    %7 = vsyncpa [#allocation5], 0
    %8 = vsyncpa [#allocation3], 0
    %9 = vsyncpa [#allocation4], 0
    // Predicated region
    $region2: #{tpu_custom_call.1} parent=1 // pred_check
      _
    $region3: #{tpu_custom_call.1} parent=1 // pred_check_branch
      %11 = sbr.rel (0) target = $region5
    $region4: #{tpu_custom_call.1} parent=1 // pred_region
      %13 = vsyncadd [#allocation5], 0
      %s15 = sshll.u32 %s0, 4
      %s16 = int_to_ptr.hbm [resolvable:$true] %s15
      %18 = dma.hbm_to_smem %s16, 16, [#allocation2], [#allocation5]
    $region5: #{tpu_custom_call.1} parent=1 // pred_fallthru
      _
    // Predicated region
    $region6: #{tpu_custom_call.1} parent=1 // pred_check
      _
    $region7: #{tpu_custom_call.1} parent=1 // pred_check_branch
      %20 = sbr.rel (0) target = $region9
    $region8: #{tpu_custom_call.1} parent=1 // pred_region
      %22 = vsyncadd [#allocation3], 0
      %s24 = sshll.u32 %s1, 4
      %s25 = int_to_ptr.hbm [resolvable:$true] %s24
      %s26 = sshll.u32 [#allocation6], 4
      %s27 = int_to_ptr.vmem [resolvable:$true] %s26
      %29 = dma.hbm_to_vmem [thread:$0]  %s25, 32, %s27, [#allocation3]
    $region9: #{tpu_custom_call.1} parent=1 // pred_fallthru
      _
    // Predicated region
    $region10: #{tpu_custom_call.1} parent=1 // pred_check
      _
    $region11: #{tpu_custom_call.1} parent=1 // pred_check_branch
      %31 = sbr.rel (0) target = $region13
    $region12: #{tpu_custom_call.1} parent=1 // pred_region
      %33 = dma.done [#allocation5], 16
    $region13: #{tpu_custom_call.1} parent=1 // pred_fallthru
      _
    // Predicated region
    $region14: #{tpu_custom_call.1} parent=1 // pred_check
      _
    $region15: #{tpu_custom_call.1} parent=1 // pred_check_branch
      %35 = sbr.rel (0) target = $region17
    $region16: #{tpu_custom_call.1} parent=1 // pred_region
      %37 = dma.done [#allocation3], 32
    $region17: #{tpu_custom_call.1} parent=1 // pred_fallthru
      _
    %38 = sfence
    %s39 = sld [smem:[#allocation2]]
    %s40 = sld [smem:[#allocation2 + $0x1]]
    %s41 = sld [smem:[#allocation2 + $0x2]]
    %v42 = vld [vmem:[#allocation6] sm:$0x3]
    %v43 = vstv %s39
    %v44 = vmul.f32 %v42, %v43
    %v45 = vstv %s40
    %v46 = vmul.f32 %v42, %v45
    %v48 = vrot.slane %v46, 1
    %v50 = vadd.f32 %v44, %v48
    %v51 = vstv %s41
    %v52 = vadd.f32 %v50, %v51
    %53 = vst [vmem:[#allocation7] sm:$0x1] %v52
    // Predicated region
    $region18: #{tpu_custom_call.1} parent=1 // pred_check
      _
    $region19: #{tpu_custom_call.1} parent=1 // pred_check_branch
      %55 = sbr.rel (0) target = $region21
    $region20: #{tpu_custom_call.1} parent=1 // pred_region
      %57 = vsyncadd [#allocation4], 0
      %s59 = sshll.u32 [#allocation7], 4
      %s60 = int_to_ptr.vmem [resolvable:$true] %s59
      %s61 = sshll.u32 %s2, 4
      %s62 = int_to_ptr.hbm [resolvable:$true] %s61
      %64 = dma.vmem_to_hbm [thread:$0]  %s60, 16, %s62, [#allocation4]
    $region21: #{tpu_custom_call.1} parent=1 // pred_fallthru
      _
    // Predicated region
    $region22: #{tpu_custom_call.1} parent=1 // pred_check
      _
    $region23: #{tpu_custom_call.1} parent=1 // pred_check_branch
      %66 = sbr.rel (0) target = $region25
    $region24: #{tpu_custom_call.1} parent=1 // pred_region
      %68 = dma.done [#allocation4], 16
    $region25: #{tpu_custom_call.1} parent=1 // pred_fallthru
      _
    %69 = vsyncpa [#allocation3], 1
    %70 = vsyncpa [#allocation4], 1
    %71 = vsyncpa [#allocation5], 1

</llo_original>
